<compile_context>
chip_gen: v6e
topology: v6e:2x2x1
jax: 0.10.0
libtpu: 0.0.40
codegen_flags: <defaults>
</compile_context>

<pallas_src>
import jax
import jax.numpy as jnp
from jax.experimental import pallas as pl
from jax.experimental.pallas import tpu as pltpu

_LANE = 128
_SUBLANE = 8


def _round_up(x, m):
    return ((x + m - 1) // m) * m


def _vmem_capacity_bytes():
    """Per-TensorCore VMEM capacity (v5e/v6e: 128 MiB, v7x: 64 MiB).

    Falls back to the smallest (v7x) value so the plan is always safe.
    """
    try:
        info = pltpu.get_tpu_info()
        cap = getattr(info, "vmem_capacity_bytes", None)
        if cap:
            return int(cap)
    except Exception:
        pass
    return 64 * 1024 * 1024


# --------------------------------------------------------------------------
# Kernel
# --------------------------------------------------------------------------
def _encoder_kernel(obs_ref, act_ref, w1o_ref, w1a_ref, b1_ref, w2_ref,
                    b2_ref, out_ref):
    """One batch tile: relu(obs@W1o + act@W1a + b1) @ W2 + b2 (all in VMEM).

    The torch.cat([obs, act]) is fused as two accumulating MXU dots.
    """
    cd = w1o_ref.dtype  # MXU input dtype (f32 or bf16); inputs cast in-kernel.
    h = jnp.dot(obs_ref[...].astype(cd), w1o_ref[...],
                preferred_element_type=jnp.float32)          # [TB, H_pad] f32
    h = h + jnp.dot(act_ref[...].astype(cd), w1a_ref[...],
                    preferred_element_type=jnp.float32)
    h = jnp.maximum(h + b1_ref[...], 0.0)                    # f32 bias + relu
    y = jnp.dot(h.astype(cd), w2_ref[...],
                preferred_element_type=jnp.float32)          # [TB, L] f32
    out_ref[...] = (y + b2_ref[...]).astype(out_ref.dtype)


# --------------------------------------------------------------------------
# One-time parameter preparation (call at init, NOT per forward)
# --------------------------------------------------------------------------
def prepare_encoder_params(w1, b1, w2, b2, obs_dim, *,
                           compute_dtype=jnp.float32):
    """Pad hidden dim to a lane multiple, split W1 into obs/act row blocks,
    cast weights to the MXU compute dtype and reshape biases to 2-D.

    w1: [input_dim, hidden], b1: [hidden], w2: [hidden, latent], b2: [latent]
    (PyTorch nn.Linear weights, pre-transposed to [in, out]).
    """
    D, H = w1.shape
    H2, L = w2.shape
    assert H == H2 and b1.shape == (H,) and b2.shape == (L,)
    act_dim = D - obs_dim
    assert 0 < obs_dim < D

    H_pad = _round_up(H, _LANE)
    w1p = jnp.pad(jnp.asarray(w1, jnp.float32), ((0, 0), (0, H_pad - H)))
    b1p = jnp.pad(jnp.asarray(b1, jnp.float32),
                  (0, H_pad - H)).reshape(1, H_pad)
    w2p = jnp.pad(jnp.asarray(w2, jnp.float32), ((0, H_pad - H), (0, 0)))
    b2p = jnp.asarray(b2, jnp.float32).reshape(1, L)

    return {
        # fused concat: x @ W1 == obs @ W1[:obs_dim] + act @ W1[obs_dim:]
        "w1o": w1p[:obs_dim].astype(compute_dtype),
        "w1a": w1p[obs_dim:].astype(compute_dtype),
        "b1": b1p,                               # f32 (bias/relu stay f32)
        "w2": w2p.astype(compute_dtype),
        "b2": b2p,                               # f32
        "obs_dim": obs_dim,
        "act_dim": act_dim,
        "hidden_pad": H_pad,
        "latent": L,
    }


# --------------------------------------------------------------------------
# Tiling / VMEM planning (generation-aware, weight-inclusive, lane-padded)
# --------------------------------------------------------------------------
def _weight_vmem_bytes(params, buffers):
    """VMEM-resident weight footprint (lane/sublane padded), x buffer count."""
    itemsize = jnp.dtype(params["w1o"].dtype).itemsize
    obs_dim, act_dim = params["obs_dim"], params["act_dim"]
    H_pad, L = params["hidden_pad"], params["latent"]
    w_bytes = (_round_up(obs_dim, _SUBLANE) * H_pad
               + _round_up(act_dim, _SUBLANE) * H_pad
               + H_pad * _round_up(L, _LANE)) * itemsize
    b_bytes = (_SUBLANE * H_pad + _SUBLANE * _round_up(L, _LANE)) * 4
    return buffers * (w_bytes + b_bytes)


def _plan_tiling(batch, params, out_dtype, weight_buffers):
    cap = _vmem_capacity_bytes()          # per-TensorCore (v7x: 64 MiB/TC)
    budget = int(cap * 0.70)              # headroom for compiler scratch
    wbytes = _weight_vmem_bytes(params, weight_buffers)

    cd = params["w1o"].dtype
    in_item = 4                           # activations stay f32 in HBM/VMEM
    out_item = jnp.dtype(out_dtype).itemsize
    # bf16 packs 16 rows per vreg; avoid half-wasted packed vregs.
    min_tb = 16 if jnp.dtype(cd).itemsize < 4 else _SUBLANE
    b_ceiling = _round_up(max(batch, min_tb), min_tb)

    obs_lane = _round_up(params["obs_dim"], _LANE)   # VMEM lane padding
    act_lane = _round_up(params["act_dim"], _LANE)
    out_lane = _round_up(params["latent"], _LANE)
    h_pad = params["hidden_pad"]

    def step_bytes(tb):
        io = 2 * tb * (obs_lane * in_item + act_lane * in_item
                       + out_lane * out_item)        # double-buffered streams
        tmp = tb * (h_pad + out_lane) * 4            # f32 h / y temporaries
        return io + tmp

    chosen = min_tb
    for tb in (2048, 1024, 512, 256, 128, 64, 32, 16, 8):
        if tb < min_tb or tb > b_ceiling:
            continue
        if wbytes + step_bytes(tb) <= budget:
            chosen = tb
            break

    need = wbytes + step_bytes(chosen)
    vmem_limit = int(min(max(int(need * 1.25), 16 * 1024 * 1024),
                         int(cap * 0.9)))
    return chosen, vmem_limit, wbytes, budget


# --------------------------------------------------------------------------
# Forward wrapper
# --------------------------------------------------------------------------
def encoder_forward(obs, act, params, *, out_dtype=jnp.float32,
                    single_buffer_weights=True):
    """obs: [B, obs_dim], act: [B, act_dim]; returns [B, latent] in out_dtype."""
    obs = jnp.asarray(obs, jnp.float32)
    act = jnp.asarray(act, jnp.float32)
    B, obs_dim = obs.shape
    Ba, act_dim = act.shape
    assert B == Ba
    assert obs_dim == params["obs_dim"] and act_dim == params["act_dim"]
    H_pad, L = params["hidden_pad"], params["latent"]

    weight_buffers = 1 if single_buffer_weights else 2
    tb, vmem_limit, wbytes, budget = _plan_tiling(B, params, out_dtype,
                                                  weight_buffers)
    if wbytes > budget:
        # TODO(synk): add K/N-tiled fallback for hidden dims too large to keep
        # W1/W2 VMEM-resident; current design requires resident weights.
        raise ValueError("Encoder weights do not fit in the per-core VMEM "
                         "budget; hidden/latent dims too large for this kernel.")

    B_pad = _round_up(max(B, tb), tb)
    if B_pad != B:
        obs = jnp.pad(obs, ((0, B_pad - B), (0, 0)))
        act = jnp.pad(act, ((0, B_pad - B), (0, 0)))
    grid = (B_pad // tb,)

    def run(use_single_buffer):
        wkw = ({"pipeline_mode": pl.Buffered(1)}
               if use_single_buffer else {})
        return pl.pallas_call(
            _encoder_kernel,
            out_shape=jax.ShapeDtypeStruct((B_pad, L), out_dtype),
            grid_spec=pltpu.PrefetchScalarGridSpec(
                num_scalar_prefetch=0,
                grid=grid,
                in_specs=[
                    # batch-tiled activations (f32, cast to MXU dtype in-kernel)
                    pl.BlockSpec((tb, obs_dim), lambda i: (i, 0)),
                    pl.BlockSpec((tb, act_dim), lambda i: (i, 0)),
                    # grid-invariant weights / biases: fetched once, reused,
                    # single-buffered (never refetched, constant index_map).
                    pl.BlockSpec((obs_dim, H_pad), lambda i: (0, 0), **wkw),
                    pl.BlockSpec((act_dim, H_pad), lambda i: (0, 0), **wkw),
                    pl.BlockSpec((1, H_pad), lambda i: (0, 0), **wkw),
                    pl.BlockSpec((H_pad, L), lambda i: (0, 0), **wkw),
                    pl.BlockSpec((1, L), lambda i: (0, 0), **wkw),
                ],
                # Unpadded latent dim: no L_pad writeback, no post-kernel slice.
                out_specs=pl.BlockSpec((tb, L), lambda i: (i, 0)),
            ),
            compiler_params=pltpu.CompilerParams(
                dimension_semantics=("parallel",),   # megacore / 2-TC sharding
                vmem_limit_bytes=vmem_limit,
            ),
        )(obs, act, params["w1o"], params["w1a"], params["b1"],
          params["w2"], params["b2"])

    if single_buffer_weights:
        try:
            out = run(True)
        except Exception:
            # Fallback if this jax build rejects Buffered(1) on inputs.
            out = run(False)
    else:
        out = run(False)

    return out if B_pad == B else out[:B]


# --------------------------------------------------------------------------
# PyTorch nn.Linear-style init (uniform +/- 1/sqrt(fan_in)), transposed.
# --------------------------------------------------------------------------
def init_encoder_params(key, input_dim, hidden_dim, latent_dim):
    k1, k2, k3, k4 = jax.random.split(key, 4)
    bound1 = 1.0 / jnp.sqrt(input_dim)
    bound2 = 1.0 / jnp.sqrt(hidden_dim)
    w1 = jax.random.uniform(k1, (input_dim, hidden_dim), jnp.float32,
                            -bound1, bound1)
    b1 = jax.random.uniform(k2, (hidden_dim,), jnp.float32, -bound1, bound1)
    w2 = jax.random.uniform(k3, (hidden_dim, latent_dim), jnp.float32,
                            -bound2, bound2)
    b2 = jax.random.uniform(k4, (latent_dim,), jnp.float32, -bound2, bound2)
    return w1, b1, w2, b2


if __name__ == "__main__":
    # Small shapes consistent with the module's forward: obs/act vectors
    # concatenated to input_dim, then hidden_dim -> latent_dim.
    batch = 8
    obs_dim = 24
    act_dim = 8
    input_dim = obs_dim + act_dim   # 32
    hidden_dim = 32
    latent_dim = 16

    key = jax.random.PRNGKey(0)
    k_obs, k_act, k_params = jax.random.split(key, 3)
    obs = jax.random.normal(k_obs, (batch, obs_dim), jnp.float32)
    act = jax.random.normal(k_act, (batch, act_dim), jnp.float32)
    w1, b1, w2, b2 = init_encoder_params(k_params, input_dim, hidden_dim,
                                         latent_dim)

    # Pure-JAX reference of the same forward pass.
    x = jnp.concatenate([obs, act], axis=-1)
    ref = jnp.maximum(x @ w1 + b1, 0.0) @ w2 + b2

    # ---- f32 path (matches the PyTorch module numerically) ----
    params_f32 = prepare_encoder_params(w1, b1, w2, b2, obs_dim,
                                        compute_dtype=jnp.float32)
    out = encoder_forward(obs, act, params_f32)
    out = jax.block_until_ready(out)
    assert out.shape == (batch, latent_dim)
    assert jnp.allclose(out, ref, atol=1e-4, rtol=1e-4), \
        float(jnp.max(jnp.abs(out - ref)))

    # ---- bf16 MXU-input fast path (f32 accumulate, bf16 writeback) ----
    # Note: bf16 matmul inputs + bf16 output are the source of the loose
    # tolerance; use the f32 path when exact parity with PyTorch is needed.
    params_bf16 = prepare_encoder_params(w1, b1, w2, b2, obs_dim,
                                         compute_dtype=jnp.bfloat16)
    out_bf16 = encoder_forward(obs, act, params_bf16,
                               out_dtype=jnp.bfloat16)
    out_bf16 = jax.block_until_ready(out_bf16)
    assert out_bf16.shape == (batch, latent_dim)
    assert out_bf16.dtype == jnp.bfloat16
    assert jnp.allclose(out_bf16.astype(jnp.float32), ref, atol=2e-1, rtol=0.0)

    print("KERNEL_OK")
</pallas_src>

<mosaic_0001>
module attributes {stable_mosaic.version = 11 : i64} {
  func.func @_encoder_kernel(%arg0: i32, %arg1: memref<8x24xf32, #tpu.memory_space<vmem>>, %arg2: memref<8x8xf32, #tpu.memory_space<vmem>>, %arg3: memref<24x128xf32, #tpu.memory_space<vmem>>, %arg4: memref<8x128xf32, #tpu.memory_space<vmem>>, %arg5: memref<1x128xf32, #tpu.memory_space<vmem>>, %arg6: memref<128x16xf32, #tpu.memory_space<vmem>>, %arg7: memref<1x16xf32, #tpu.memory_space<vmem>>, %arg8: memref<8x16xf32, #tpu.memory_space<vmem>>) attributes {dimension_semantics = [#tpu.dimension_semantics<parallel>], iteration_bounds = array<i64: 1>, scalar_prefetch = 0 : i64, scratch_operands = 0 : i64, tpu.core_type = #tpu.core_type<tc>, window_params = [{transform_indices = @transform_0, window_bounds = array<i64: 8, 24>}, {transform_indices = @transform_1, window_bounds = array<i64: 8, 8>}, {pipeline_mode = #tpu.pipeline_mode<synchronous>, transform_indices = @transform_2, window_bounds = array<i64: 24, 128>}, {pipeline_mode = #tpu.pipeline_mode<synchronous>, transform_indices = @transform_3, window_bounds = array<i64: 8, 128>}, {pipeline_mode = #tpu.pipeline_mode<synchronous>, transform_indices = @transform_4, window_bounds = array<i64: 1, 128>}, {pipeline_mode = #tpu.pipeline_mode<synchronous>, transform_indices = @transform_5, window_bounds = array<i64: 128, 16>}, {pipeline_mode = #tpu.pipeline_mode<synchronous>, transform_indices = @transform_6, window_bounds = array<i64: 1, 16>}, {transform_indices = @transform_7, window_bounds = array<i64: 8, 16>}]} {
    %c0 = arith.constant 0 : index
    %c0_0 = arith.constant 0 : index
    %0 = vector.load %arg1[%c0, %c0_0] : memref<8x24xf32, #tpu.memory_space<vmem>>, vector<8x24xf32>
    %c0_1 = arith.constant 0 : index
    %c0_2 = arith.constant 0 : index
    %1 = vector.load %arg3[%c0_1, %c0_2] : memref<24x128xf32, #tpu.memory_space<vmem>>, vector<24x128xf32>
    %cst = arith.constant dense<0.000000e+00> : vector<8x128xf32>
    %2 = tpu.matmul %0, %1, %cst {dimension_numbers = #tpu.dot_dimension_numbers<[1], [0], [0], [1], [0, 0, 1, 1], [], []>} : vector<8x24xf32>, vector<24x128xf32>, vector<8x128xf32> -> vector<8x128xf32>
    %c0_3 = arith.constant 0 : index
    %c0_4 = arith.constant 0 : index
    %3 = vector.load %arg2[%c0_3, %c0_4] : memref<8x8xf32, #tpu.memory_space<vmem>>, vector<8x8xf32>
    %c0_5 = arith.constant 0 : index
    %c0_6 = arith.constant 0 : index
    %4 = vector.load %arg4[%c0_5, %c0_6] : memref<8x128xf32, #tpu.memory_space<vmem>>, vector<8x128xf32>
    %cst_7 = arith.constant dense<0.000000e+00> : vector<8x128xf32>
    %5 = tpu.matmul %3, %4, %cst_7 {dimension_numbers = #tpu.dot_dimension_numbers<[1], [0], [0], [1], [0, 0, 1, 1], [], []>} : vector<8x8xf32>, vector<8x128xf32>, vector<8x128xf32> -> vector<8x128xf32>
    %6 = arith.addf %2, %5 : vector<8x128xf32>
    %c0_8 = arith.constant 0 : index
    %c0_9 = arith.constant 0 : index
    %7 = vector.load %arg5[%c0_8, %c0_9] : memref<1x128xf32, #tpu.memory_space<vmem>>, vector<1x128xf32>
    %8 = vector.broadcast %7 : vector<1x128xf32> to vector<8x128xf32>
    %9 = arith.addf %6, %8 : vector<8x128xf32>
    %cst_10 = arith.constant 0.000000e+00 : f32
    %10 = vector.broadcast %cst_10 : f32 to vector<8x128xf32>
    %11 = arith.maximumf %9, %10 : vector<8x128xf32>
    %c0_11 = arith.constant 0 : index
    %c0_12 = arith.constant 0 : index
    %12 = vector.load %arg6[%c0_11, %c0_12] : memref<128x16xf32, #tpu.memory_space<vmem>>, vector<128x16xf32>
    %cst_13 = arith.constant dense<0.000000e+00> : vector<8x16xf32>
    %13 = tpu.matmul %11, %12, %cst_13 {dimension_numbers = #tpu.dot_dimension_numbers<[1], [0], [0], [1], [0, 0, 1, 1], [], []>} : vector<8x128xf32>, vector<128x16xf32>, vector<8x16xf32> -> vector<8x16xf32>
    %c0_14 = arith.constant 0 : index
    %c0_15 = arith.constant 0 : index
    %14 = vector.load %arg7[%c0_14, %c0_15] : memref<1x16xf32, #tpu.memory_space<vmem>>, vector<1x16xf32>
    %15 = vector.broadcast %14 : vector<1x16xf32> to vector<8x16xf32>
    %16 = arith.addf %13, %15 : vector<8x16xf32>
    %c0_16 = arith.constant 0 : index
    %c0_17 = arith.constant 0 : index
    %17 = vector.load %arg8[%c0_16, %c0_17] : memref<8x16xf32, #tpu.memory_space<vmem>>, vector<8x16xf32>
    tpu.vector_store %arg8[%c0_16, %c0_17], %16 {strides = array<i32>} : memref<8x16xf32, #tpu.memory_space<vmem>>, vector<8x16xf32>,
    return
  }
  func.func @transform_0(%arg0: i32) -> (i32, i32) {
    %c0_i32 = arith.constant 0 : i32
    %c0_i32_0 = arith.constant 0 : i32
    return %arg0, %c0_i32 : i32, i32
  }
  func.func @transform_1(%arg0: i32) -> (i32, i32) {
    %c0_i32 = arith.constant 0 : i32
    %c0_i32_0 = arith.constant 0 : i32
    return %arg0, %c0_i32 : i32, i32
  }
  func.func @transform_2(%arg0: i32) -> (i32, i32) {
    %c0_i32 = arith.constant 0 : i32
    %c0_i32_0 = arith.constant 0 : i32
    %c0_i32_1 = arith.constant 0 : i32
    return %c0_i32, %c0_i32_0 : i32, i32
  }
  func.func @transform_3(%arg0: i32) -> (i32, i32) {
    %c0_i32 = arith.constant 0 : i32
    %c0_i32_0 = arith.constant 0 : i32
    %c0_i32_1 = arith.constant 0 : i32
    return %c0_i32, %c0_i32_0 : i32, i32
  }
  func.func @transform_4(%arg0: i32) -> (i32, i32) {
    %c0_i32 = arith.constant 0 : i32
    %c0_i32_0 = arith.constant 0 : i32
    %c0_i32_1 = arith.constant 0 : i32
    return %c0_i32, %c0_i32_0 : i32, i32
  }
  func.func @transform_5(%arg0: i32) -> (i32, i32) {
    %c0_i32 = arith.constant 0 : i32
    %c0_i32_0 = arith.constant 0 : i32
    %c0_i32_1 = arith.constant 0 : i32
    return %c0_i32, %c0_i32_0 : i32, i32
  }
  func.func @transform_6(%arg0: i32) -> (i32, i32) {
    %c0_i32 = arith.constant 0 : i32
    %c0_i32_0 = arith.constant 0 : i32
    %c0_i32_1 = arith.constant 0 : i32
    return %c0_i32, %c0_i32_0 : i32, i32
  }
  func.func @transform_7(%arg0: i32) -> (i32, i32) {
    %c0_i32 = arith.constant 0 : i32
    %c0_i32_0 = arith.constant 0 : i32
    return %arg0, %c0_i32 : i32, i32
  }
}

module attributes {stable_mosaic.version = 11 : i64} {
  func.func @_encoder_kernel(%arg0: i32, %arg1: memref<8x24xf32, #tpu.memory_space<vmem>>, %arg2: memref<8x8xf32, #tpu.memory_space<vmem>>, %arg3: memref<24x128xf32, #tpu.memory_space<vmem>>, %arg4: memref<8x128xf32, #tpu.memory_space<vmem>>, %arg5: memref<1x128xf32, #tpu.memory_space<vmem>>, %arg6: memref<128x16xf32, #tpu.memory_space<vmem>>, %arg7: memref<1x16xf32, #tpu.memory_space<vmem>>, %arg8: memref<8x16xf32, #tpu.memory_space<vmem>>) attributes {dimension_semantics = [#tpu.dimension_semantics<parallel>], iteration_bounds = array<i64: 1>, scalar_prefetch = 0 : i64, scratch_operands = 0 : i64, tpu.core_type = #tpu.core_type<tc>, window_params = [{transform_indices = @transform_0, window_bounds = array<i64: 8, 24>}, {transform_indices = @transform_1, window_bounds = array<i64: 8, 8>}, {pipeline_mode = #tpu.pipeline_mode<synchronous>, transform_indices = @transform_2, window_bounds = array<i64: 24, 128>}, {pipeline_mode = #tpu.pipeline_mode<synchronous>, transform_indices = @transform_3, window_bounds = array<i64: 8, 128>}, {pipeline_mode = #tpu.pipeline_mode<synchronous>, transform_indices = @transform_4, window_bounds = array<i64: 1, 128>}, {pipeline_mode = #tpu.pipeline_mode<synchronous>, transform_indices = @transform_5, window_bounds = array<i64: 128, 16>}, {pipeline_mode = #tpu.pipeline_mode<synchronous>, transform_indices = @transform_6, window_bounds = array<i64: 1, 16>}, {transform_indices = @transform_7, window_bounds = array<i64: 8, 16>}]} {
    %c0 = arith.constant 0 : index
    %c0_0 = arith.constant 0 : index
    %0 = vector.load %arg1[%c0, %c0_0] : memref<8x24xf32, #tpu.memory_space<vmem>>, vector<8x24xf32>
    %c0_1 = arith.constant 0 : index
    %c0_2 = arith.constant 0 : index
    %1 = vector.load %arg3[%c0_1, %c0_2] : memref<24x128xf32, #tpu.memory_space<vmem>>, vector<24x128xf32>
    %cst = arith.constant dense<0.000000e+00> : vector<8x128xf32>
    %2 = tpu.matmul %0, %1, %cst {dimension_numbers = #tpu.dot_dimension_numbers<[1], [0], [0], [1], [0, 0, 1, 1], [], []>} : vector<8x24xf32>, vector<24x128xf32>, vector<8x128xf32> -> vector<8x128xf32>
    %c0_3 = arith.constant 0 : index
    %c0_4 = arith.constant 0 : index
    %3 = vector.load %arg2[%c0_3, %c0_4] : memref<8x8xf32, #tpu.memory_space<vmem>>, vector<8x8xf32>
    %c0_5 = arith.constant 0 : index
    %c0_6 = arith.constant 0 : index
    %4 = vector.load %arg4[%c0_5, %c0_6] : memref<8x128xf32, #tpu.memory_space<vmem>>, vector<8x128xf32>
    %cst_7 = arith.constant dense<0.000000e+00> : vector<8x128xf32>
    %5 = tpu.matmul %3, %4, %cst_7 {dimension_numbers = #tpu.dot_dimension_numbers<[1], [0], [0], [1], [0, 0, 1, 1], [], []>} : vector<8x8xf32>, vector<8x128xf32>, vector<8x128xf32> -> vector<8x128xf32>
    %6 = arith.addf %2, %5 : vector<8x128xf32>
    %c0_8 = arith.constant 0 : index
    %c0_9 = arith.constant 0 : index
    %7 = vector.load %arg5[%c0_8, %c0_9] : memref<1x128xf32, #tpu.memory_space<vmem>>, vector<1x128xf32>
    %8 = vector.broadcast %7 : vector<1x128xf32> to vector<8x128xf32>
    %9 = arith.addf %6, %8 : vector<8x128xf32>
    %cst_10 = arith.constant 0.000000e+00 : f32
    %10 = vector.broadcast %cst_10 : f32 to vector<8x128xf32>
    %11 = arith.maximumf %9, %10 : vector<8x128xf32>
    %c0_11 = arith.constant 0 : index
    %c0_12 = arith.constant 0 : index
    %12 = vector.load %arg6[%c0_11, %c0_12] : memref<128x16xf32, #tpu.memory_space<vmem>>, vector<128x16xf32>
    %cst_13 = arith.constant dense<0.000000e+00> : vector<8x16xf32>
    %13 = tpu.matmul %11, %12, %cst_13 {dimension_numbers = #tpu.dot_dimension_numbers<[1], [0], [0], [1], [0, 0, 1, 1], [], []>} : vector<8x128xf32>, vector<128x16xf32>, vector<8x16xf32> -> vector<8x16xf32>
    %c0_14 = arith.constant 0 : index
    %c0_15 = arith.constant 0 : index
    %14 = vector.load %arg7[%c0_14, %c0_15] : memref<1x16xf32, #tpu.memory_space<vmem>>, vector<1x16xf32>
    %15 = vector.broadcast %14 : vector<1x16xf32> to vector<8x16xf32>
    %16 = arith.addf %13, %15 : vector<8x16xf32>
    %c0_16 = arith.constant 0 : index
    %c0_17 = arith.constant 0 : index
    %17 = vector.load %arg8[%c0_16, %c0_17] : memref<8x16xf32, #tpu.memory_space<vmem>>, vector<8x16xf32>
    tpu.vector_store %arg8[%c0_16, %c0_17], %16 {strides = array<i32>} : memref<8x16xf32, #tpu.memory_space<vmem>>, vector<8x16xf32>,
    return
  }
  func.func @transform_0(%arg0: i32) -> (i32, i32) {
    %c0_i32 = arith.constant 0 : i32
    %c0_i32_0 = arith.constant 0 : i32
    return %arg0, %c0_i32 : i32, i32
  }
  func.func @transform_1(%arg0: i32) -> (i32, i32) {
    %c0_i32 = arith.constant 0 : i32
    %c0_i32_0 = arith.constant 0 : i32
    return %arg0, %c0_i32 : i32, i32
  }
  func.func @transform_2(%arg0: i32) -> (i32, i32) {
    %c0_i32 = arith.constant 0 : i32
    %c0_i32_0 = arith.constant 0 : i32
    %c0_i32_1 = arith.constant 0 : i32
    return %c0_i32, %c0_i32_0 : i32, i32
  }
  func.func @transform_3(%arg0: i32) -> (i32, i32) {
    %c0_i32 = arith.constant 0 : i32
    %c0_i32_0 = arith.constant 0 : i32
    %c0_i32_1 = arith.constant 0 : i32
    return %c0_i32, %c0_i32_0 : i32, i32
  }
  func.func @transform_4(%arg0: i32) -> (i32, i32) {
    %c0_i32 = arith.constant 0 : i32
    %c0_i32_0 = arith.constant 0 : i32
    %c0_i32_1 = arith.constant 0 : i32
    return %c0_i32, %c0_i32_0 : i32, i32
  }
  func.func @transform_5(%arg0: i32) -> (i32, i32) {
    %c0_i32 = arith.constant 0 : i32
    %c0_i32_0 = arith.constant 0 : i32
    %c0_i32_1 = arith.constant 0 : i32
    return %c0_i32, %c0_i32_0 : i32, i32
  }
  func.func @transform_6(%arg0: i32) -> (i32, i32) {
    %c0_i32 = arith.constant 0 : i32
    %c0_i32_0 = arith.constant 0 : i32
    %c0_i32_1 = arith.constant 0 : i32
    return %c0_i32, %c0_i32_0 : i32, i32
  }
  func.func @transform_7(%arg0: i32) -> (i32, i32) {
    %c0_i32 = arith.constant 0 : i32
    %c0_i32_0 = arith.constant 0 : i32
    return %arg0, %c0_i32 : i32, i32
  }
}

</mosaic_0001>

<llo_original>
// kernel: tpu_custom_call.1
$region0: #{tpu_custom_call.1}
  #allocation0 [shape = 'u32[]', space=smem, size = 0x4, offset = 0x4, fixed_abs, tag = 'smem constant byte address 0x4 - core index']
  #allocation1 [shape = 'u32[144,128]{1,0:T(1,128)}', space=vmem, size = 0x12000, scoped, tag = 'internal scratch']
  %s0 = inlined_call_operand.vmem [shape: f32[8,24], index: 0, kind: input, shape index: {}]
  %s1 = inlined_call_operand.vmem [shape: f32[8,8], index: 1, kind: input, shape index: {}]
  %s2 = inlined_call_operand.vmem [shape: f32[24,128], index: 2, kind: input, shape index: {}]
  %s3 = inlined_call_operand.vmem [shape: f32[8,128], index: 3, kind: input, shape index: {}]
  %s4 = inlined_call_operand.vmem [shape: f32[1,128], index: 4, kind: input, shape index: {}]
  %s5 = inlined_call_operand.vmem [shape: f32[128,16], index: 5, kind: input, shape index: {}]
  %s6 = inlined_call_operand.vmem [shape: f32[1,16], index: 6, kind: input, shape index: {}]
  %s7 = inlined_call_operand.hbm [shape: f32[8,16], index: 7, kind: output, shape index: {}]
  %s8 = sld [smem:[#allocation0]]
  $region38: #{tpu_custom_call.1} parent=0
    _
  %s10 = ssub.s32 1, %s8
  %s11 = scalar_select 0, %s10, %s8
  $region1: #{tpu_custom_call.1} parent=0
    #allocation2 [shape = 'u8[4096]{0}', space=vmem, size = 0x1000, scoped, tag = 'output window, operand 0, single buffered']
    #allocation3 [shape = 's32[1]{0}', space=sflag, size = 0x4, scoped, tag = 'scoped memory for tpu_custom_call.1']
    %12 = vsyncpa [#allocation3], 0
    // Predicated region
    $region2: #{tpu_custom_call.1} parent=1 // pred_check
      _
    $region3: #{tpu_custom_call.1} parent=1 // pred_check_branch
      %14 = sbr.rel (0) target = $region5
    $region4: #{tpu_custom_call.1} parent=1 // pred_region
      _
    $region5: #{tpu_custom_call.1} parent=1 // pred_fallthru
      _
    // Predicated region
    $region6: #{tpu_custom_call.1} parent=1 // pred_check
      _
    $region7: #{tpu_custom_call.1} parent=1 // pred_check_branch
      %16 = sbr.rel (0) target = $region9
    $region8: #{tpu_custom_call.1} parent=1 // pred_region
      _
    $region9: #{tpu_custom_call.1} parent=1 // pred_fallthru
      _
    // Predicated region
    $region10: #{tpu_custom_call.1} parent=1 // pred_check
      _
    $region11: #{tpu_custom_call.1} parent=1 // pred_check_branch
      %18 = sbr.rel (0) target = $region13
    $region12: #{tpu_custom_call.1} parent=1 // pred_region
      _
    $region13: #{tpu_custom_call.1} parent=1 // pred_fallthru
      _
    // Predicated region
    $region14: #{tpu_custom_call.1} parent=1 // pred_check
      _
    $region15: #{tpu_custom_call.1} parent=1 // pred_check_branch
      %20 = sbr.rel (0) target = $region17
    $region16: #{tpu_custom_call.1} parent=1 // pred_region
      _
    $region17: #{tpu_custom_call.1} parent=1 // pred_fallthru
      _
    // Predicated region
    $region18: #{tpu_custom_call.1} parent=1 // pred_check
      _
    $region19: #{tpu_custom_call.1} parent=1 // pred_check_branch
      %22 = sbr.rel (0) target = $region21
    $region20: #{tpu_custom_call.1} parent=1 // pred_region
      _
    $region21: #{tpu_custom_call.1} parent=1 // pred_fallthru
      _
    // Predicated region
    $region22: #{tpu_custom_call.1} parent=1 // pred_check
      _
    $region23: #{tpu_custom_call.1} parent=1 // pred_check_branch
      %24 = sbr.rel (0) target = $region25
    $region24: #{tpu_custom_call.1} parent=1 // pred_region
      _
    $region25: #{tpu_custom_call.1} parent=1 // pred_fallthru
      _
    // Predicated region
    $region26: #{tpu_custom_call.1} parent=1 // pred_check
      _
    $region27: #{tpu_custom_call.1} parent=1 // pred_check_branch
      %26 = sbr.rel (0) target = $region29
    $region28: #{tpu_custom_call.1} parent=1 // pred_region
      _
    $region29: #{tpu_custom_call.1} parent=1 // pred_fallthru
      _
    %v27 = vld [vmem:[%s0] sm:$0xff]
    %v28 = vld [vmem:[%s2] sm:$0xff]
    %v29 = vld [vmem:[%s2 + $0x8] sm:$0xff]
    %v30 = vld [vmem:[%s2 + $0x10] sm:$0xff]
    %v31 = vld [vmem:[%s1] sm:$0xff]
    %v32 = vld [vmem:[%s3] sm:$0xff]
    %vm33 = vcmask 64512
    %v35 = vsel %vm33, %v31, 0
    %37 = vmatprep.subr.mxu0 0.0
    %38 = vmatpush1.msra.mxu0 0.0
    %39 = vmatprep.subr.mxu0 0.0
    %40 = vmatpush1.msra.mxu0 0.0
    %41 = vmatprep.subr.mxu0 0.0
    %42 = vmatpush1.msra.mxu0 0.0
    %43 = vmatprep.subr.mxu0 0.0
    %44 = vmatpush1.msra.mxu0 0.0
    %45 = vmatprep.subr.mxu0 0.0
    %46 = vmatpush1.msra.mxu0 0.0
    %47 = vmatprep.subr.mxu0 0.0
    %48 = vmatpush1.msra.mxu0 0.0
    %49 = vmatprep.subr.mxu0 0.0
    %50 = vmatpush1.msra.mxu0 0.0
    %51 = vmatprep.subr.mxu0 0.0
    %52 = vmatpush1.msra.mxu0 0.0
    %53 = vmatprep.subr.mxu0 0.0
    %54 = vmatpush1.msra.mxu0 0.0
    %55 = vmatprep.subr.mxu0 0.0
    %56 = vmatpush1.msra.mxu0 0.0
    %57 = vmatprep.subr.mxu0 0.0
    %58 = vmatpush1.msra.mxu0 0.0
    %59 = vmatprep.subr.mxu0 0.0
    %60 = vmatpush1.msra.mxu0 0.0
    %61 = vmatprep.subr.mxu0 0.0
    %62 = vmatpush1.msra.mxu0 0.0
    %63 = vmatprep.subr.mxu0 0.0
    %64 = vmatpush1.msra.mxu0 0.0
    %65 = vmatprep.subr.mxu0 0.0
    %66 = vmatpush1.msra.mxu0 0.0
    %67 = vmatprep.subr.mxu0 0.0
    %68 = vmatpush1.msra.mxu0 %v32
    %69 = vmatprep.subr.mxu0 0.0
    %70 = vmatpush2.msra.mxu0 0.0
    %71 = vmatprep.subr.mxu0 0.0
    %72 = vmatpush2.msra.mxu0 0.0
    %73 = vmatprep.subr.mxu0 0.0
    %74 = vmatpush2.msra.mxu0 0.0
    %75 = vmatprep.subr.mxu0 0.0
    %76 = vmatpush2.msra.mxu0 0.0
    %77 = vmatprep.subr.mxu0 0.0
    %78 = vmatpush2.msra.mxu0 0.0
    %79 = vmatprep.subr.mxu0 0.0
    %80 = vmatpush2.msra.mxu0 0.0
    %81 = vmatprep.subr.mxu0 0.0
    %82 = vmatpush2.msra.mxu0 0.0
    %83 = vmatprep.subr.mxu0 0.0
    %84 = vmatpush2.msra.mxu0 0.0
    %85 = vmatprep.subr.mxu0 0.0
    %86 = vmatpush2.msra.mxu0 0.0
    %87 = vmatprep.subr.mxu0 0.0
    %88 = vmatpush2.msra.mxu0 0.0
    %89 = vmatprep.subr.mxu0 0.0
    %90 = vmatpush2.msra.mxu0 0.0
    %91 = vmatprep.subr.mxu0 0.0
    %92 = vmatpush2.msra.mxu0 0.0
    %93 = vmatprep.subr.mxu0 0.0
    %94 = vmatpush2.msra.mxu0 0.0
    %95 = vmatprep.subr.mxu0 0.0
    %96 = vmatpush2.msra.mxu0 0.0
    %97 = vmatprep.subr.mxu0 0.0
    %98 = vmatpush2.msra.mxu0 0.0
    %99 = vmatprep.subr.mxu0 0.0
    %100 = vmatpush2.msra.mxu0 0.0
    %101 = vmatprep.mubr.f32.mxu0 0.0
    %102 = vmatmul.mubr.f32.gmra.mxu0 %v35
    %v103 = vpop.f32.mrf.mxu0
    %v104 = vadd.f32 0.0, %v103
    %v105 = vpop.f32.mrf.mxu0
    %106 = vdwg.mxu0
    %vm107 = vcmask 195584
    %v109 = vsel %vm107, %v27, 0
    %111 = vmatprep.subr.mxu0 0.0
    %112 = vmatpush1.msra.mxu0 0.0
    %113 = vmatprep.subr.mxu0 0.0
    %114 = vmatpush1.msra.mxu0 0.0
    %115 = vmatprep.subr.mxu0 0.0
    %116 = vmatpush1.msra.mxu0 0.0
    %117 = vmatprep.subr.mxu0 0.0
    %118 = vmatpush1.msra.mxu0 0.0
    %119 = vmatprep.subr.mxu0 0.0
    %120 = vmatpush1.msra.mxu0 0.0
    %121 = vmatprep.subr.mxu0 0.0
    %122 = vmatpush1.msra.mxu0 0.0
    %123 = vmatprep.subr.mxu0 0.0
    %124 = vmatpush1.msra.mxu0 0.0
    %125 = vmatprep.subr.mxu0 0.0
    %126 = vmatpush1.msra.mxu0 0.0
    %127 = vmatprep.subr.mxu0 0.0
    %128 = vmatpush1.msra.mxu0 0.0
    %129 = vmatprep.subr.mxu0 0.0
    %130 = vmatpush1.msra.mxu0 0.0
    %131 = vmatprep.subr.mxu0 0.0
    %132 = vmatpush1.msra.mxu0 0.0
    %133 = vmatprep.subr.mxu0 0.0
    %134 = vmatpush1.msra.mxu0 0.0
    %135 = vmatprep.subr.mxu0 0.0
    %136 = vmatpush1.msra.mxu0 0.0
    %137 = vmatprep.subr.mxu0 0.0
    %138 = vmatpush1.msra.mxu0 %v30
    %139 = vmatprep.subr.mxu0 0.0
    %140 = vmatpush1.msra.mxu0 %v29
    %141 = vmatprep.subr.mxu0 0.0
    %142 = vmatpush1.msra.mxu0 %v28
    %143 = vmatprep.subr.mxu0 0.0
    %144 = vmatpush2.msra.mxu0 0.0
    %145 = vmatprep.subr.mxu0 0.0
    %146 = vmatpush2.msra.mxu0 0.0
    %147 = vmatprep.subr.mxu0 0.0
    %148 = vmatpush2.msra.mxu0 0.0
    %149 = vmatprep.subr.mxu0 0.0
    %150 = vmatpush2.msra.mxu0 0.0
    %151 = vmatprep.subr.mxu0 0.0
    %152 = vmatpush2.msra.mxu0 0.0
    %153 = vmatprep.subr.mxu0 0.0
    %154 = vmatpush2.msra.mxu0 0.0
    %155 = vmatprep.subr.mxu0 0.0
    %156 = vmatpush2.msra.mxu0 0.0
    %157 = vmatprep.subr.mxu0 0.0
    %158 = vmatpush2.msra.mxu0 0.0
    %159 = vmatprep.subr.mxu0 0.0
    %160 = vmatpush2.msra.mxu0 0.0
    %161 = vmatprep.subr.mxu0 0.0
    %162 = vmatpush2.msra.mxu0 0.0
    %163 = vmatprep.subr.mxu0 0.0
    %164 = vmatpush2.msra.mxu0 0.0
    %165 = vmatprep.subr.mxu0 0.0
    %166 = vmatpush2.msra.mxu0 0.0
    %167 = vmatprep.subr.mxu0 0.0
    %168 = vmatpush2.msra.mxu0 0.0
    %169 = vmatprep.subr.mxu0 0.0
    %170 = vmatpush2.msra.mxu0 0.0
    %171 = vmatprep.subr.mxu0 0.0
    %172 = vmatpush2.msra.mxu0 0.0
    %173 = vmatprep.subr.mxu0 0.0
    %174 = vmatpush2.msra.mxu0 0.0
    %175 = vmatprep.mubr.f32.mxu0 0.0
    %176 = vmatmul.mubr.f32.gmra.mxu0 %v109
    %v177 = vpop.f32.mrf.mxu0
    %v178 = vadd.f32 %v104, %v177
    %v179 = vpop.f32.mrf.mxu0
    %180 = vdwg.mxu0
    %v181 = vld [vmem:[%s4] sm:$0x1]
    %v183 = vlaneseq
    %v184 = vshrl.u32 %v183, 7
    %v185 = vsub.s32 0, %v184
    %v186 = vrot.slane %v181, %v185
    %v188 = vadd.f32 %v178, %v186
    %v189 = vmax.f32 %v188, 0.0
    %v190 = vld [vmem:[%s5] sm:$0xff]
    %v191 = vld [vmem:[%s5 + $0x8] sm:$0xff]
    %v192 = vld [vmem:[%s5 + $0x10] sm:$0xff]
    %v193 = vld [vmem:[%s5 + $0x18] sm:$0xff]
    %v194 = vld [vmem:[%s5 + $0x20] sm:$0xff]
    %v195 = vld [vmem:[%s5 + $0x28] sm:$0xff]
    %v196 = vld [vmem:[%s5 + $0x30] sm:$0xff]
    %v197 = vld [vmem:[%s5 + $0x38] sm:$0xff]
    %v198 = vld [vmem:[%s5 + $0x40] sm:$0xff]
    %v199 = vld [vmem:[%s5 + $0x48] sm:$0xff]
    %v200 = vld [vmem:[%s5 + $0x50] sm:$0xff]
    %v201 = vld [vmem:[%s5 + $0x58] sm:$0xff]
    %v202 = vld [vmem:[%s5 + $0x60] sm:$0xff]
    %v203 = vld [vmem:[%s5 + $0x68] sm:$0xff]
    %v204 = vld [vmem:[%s5 + $0x70] sm:$0xff]
    %v205 = vld [vmem:[%s5 + $0x78] sm:$0xff]
    %v206 = vld [vmem:[%s6] sm:$0x1]
    %v208 = vlaneseq
    %v209 = vshrl.u32 %v208, 7
    %v210 = vsub.s32 0, %v209
    %v211 = vrot.slane %v206, %v210
    %213 = vmatprep.subr.mxu0 0.0
    %214 = vmatpush1.msra.mxu0 %v205
    %215 = vmatprep.subr.mxu0 0.0
    %216 = vmatpush1.msra.mxu0 %v204
    %217 = vmatprep.subr.mxu0 0.0
    %218 = vmatpush1.msra.mxu0 %v203
    %219 = vmatprep.subr.mxu0 0.0
    %220 = vmatpush1.msra.mxu0 %v202
    %221 = vmatprep.subr.mxu0 0.0
    %222 = vmatpush1.msra.mxu0 %v201
    %223 = vmatprep.subr.mxu0 0.0
    %224 = vmatpush1.msra.mxu0 %v200
    %225 = vmatprep.subr.mxu0 0.0
    %226 = vmatpush1.msra.mxu0 %v199
    %227 = vmatprep.subr.mxu0 0.0
    %228 = vmatpush1.msra.mxu0 %v198
    %229 = vmatprep.subr.mxu0 0.0
    %230 = vmatpush1.msra.mxu0 %v197
    %231 = vmatprep.subr.mxu0 0.0
    %232 = vmatpush1.msra.mxu0 %v196
    %233 = vmatprep.subr.mxu0 0.0
    %234 = vmatpush1.msra.mxu0 %v195
    %235 = vmatprep.subr.mxu0 0.0
    %236 = vmatpush1.msra.mxu0 %v194
    %237 = vmatprep.subr.mxu0 0.0
    %238 = vmatpush1.msra.mxu0 %v193
    %239 = vmatprep.subr.mxu0 0.0
    %240 = vmatpush1.msra.mxu0 %v192
    %241 = vmatprep.subr.mxu0 0.0
    %242 = vmatpush1.msra.mxu0 %v191
    %243 = vmatprep.subr.mxu0 0.0
    %244 = vmatpush1.msra.mxu0 %v190
    %245 = vmatprep.subr.mxu0 0.0
    %246 = vmatpush2.msra.mxu0 0.0
    %247 = vmatprep.subr.mxu0 0.0
    %248 = vmatpush2.msra.mxu0 0.0
    %249 = vmatprep.subr.mxu0 0.0
    %250 = vmatpush2.msra.mxu0 0.0
    %251 = vmatprep.subr.mxu0 0.0
    %252 = vmatpush2.msra.mxu0 0.0
    %253 = vmatprep.subr.mxu0 0.0
    %254 = vmatpush2.msra.mxu0 0.0
    %255 = vmatprep.subr.mxu0 0.0
    %256 = vmatpush2.msra.mxu0 0.0
    %257 = vmatprep.subr.mxu0 0.0
    %258 = vmatpush2.msra.mxu0 0.0
    %259 = vmatprep.subr.mxu0 0.0
    %260 = vmatpush2.msra.mxu0 0.0
    %261 = vmatprep.subr.mxu0 0.0
    %262 = vmatpush2.msra.mxu0 0.0
    %263 = vmatprep.subr.mxu0 0.0
    %264 = vmatpush2.msra.mxu0 0.0
    %265 = vmatprep.subr.mxu0 0.0
    %266 = vmatpush2.msra.mxu0 0.0
    %267 = vmatprep.subr.mxu0 0.0
    %268 = vmatpush2.msra.mxu0 0.0
    %269 = vmatprep.subr.mxu0 0.0
    %270 = vmatpush2.msra.mxu0 0.0
    %271 = vmatprep.subr.mxu0 0.0
    %272 = vmatpush2.msra.mxu0 0.0
    %273 = vmatprep.subr.mxu0 0.0
    %274 = vmatpush2.msra.mxu0 0.0
    %275 = vmatprep.subr.mxu0 0.0
    %276 = vmatpush2.msra.mxu0 0.0
    %277 = vmatprep.mubr.f32.mxu0 0.0
    %278 = vmatmul.mubr.f32.gmra.mxu0 %v189
    %v279 = vpop.f32.mrf.mxu0
    %v280 = vadd.f32 %v211, %v279
    %v281 = vpop.f32.mrf.mxu0
    %282 = vdwg.mxu0
    %vm283 = vcmask 130048
    %284 = vst.msk [vmem:[#allocation2] sm:$0xff] %vm283, %v280
    // Predicated region
    $region30: #{tpu_custom_call.1} parent=1 // pred_check
      _
    $region31: #{tpu_custom_call.1} parent=1 // pred_check_branch
      %286 = sbr.rel (0) target = $region33
    $region32: #{tpu_custom_call.1} parent=1 // pred_region
      %s288 = ssub.s32 128, 128
      %289 = vsyncadd [#allocation3], %s288
      %s291 = sshll.u32 [#allocation2], 4
      %s292 = int_to_ptr.vmem [resolvable:$true] %s291
      %294 = dma.vmem_to_hbm [thread:$0]  %s292, 128, %s7, [#allocation3]
    $region33: #{tpu_custom_call.1} parent=1 // pred_fallthru
      _
    // Predicated region
    $region34: #{tpu_custom_call.1} parent=1 // pred_check
      _
    $region35: #{tpu_custom_call.1} parent=1 // pred_check_branch
      %296 = sbr.rel (0) target = $region37
    $region36: #{tpu_custom_call.1} parent=1 // pred_region
      %297 = dma.done [#allocation3], 128
    $region37: #{tpu_custom_call.1} parent=1 // pred_fallthru
      _
    %298 = vsyncpa [#allocation3], 1

// kernel: tpu_custom_call.1
$region0: #{tpu_custom_call.1}
  #allocation0 [shape = 'u32[]', space=smem, size = 0x4, offset = 0x4, fixed_abs, tag = 'smem constant byte address 0x4 - core index']
  #allocation1 [shape = 'u32[144,128]{1,0:T(1,128)}', space=vmem, size = 0x12000, scoped, tag = 'internal scratch']
  %s0 = inlined_call_operand.vmem [shape: f32[8,24], index: 0, kind: input, shape index: {}]
  %s1 = inlined_call_operand.vmem [shape: f32[8,8], index: 1, kind: input, shape index: {}]
  %s2 = inlined_call_operand.vmem [shape: f32[24,128], index: 2, kind: input, shape index: {}]
  %s3 = inlined_call_operand.vmem [shape: f32[8,128], index: 3, kind: input, shape index: {}]
  %s4 = inlined_call_operand.vmem [shape: f32[1,128], index: 4, kind: input, shape index: {}]
  %s5 = inlined_call_operand.vmem [shape: f32[128,16], index: 5, kind: input, shape index: {}]
  %s6 = inlined_call_operand.vmem [shape: f32[1,16], index: 6, kind: input, shape index: {}]
  %s7 = inlined_call_operand.hbm [shape: f32[8,16], index: 7, kind: output, shape index: {}]
  %s8 = sld [smem:[#allocation0]]
  $region38: #{tpu_custom_call.1} parent=0
    _
  %s10 = ssub.s32 1, %s8
  %s11 = scalar_select 0, %s10, %s8
  $region1: #{tpu_custom_call.1} parent=0
    #allocation2 [shape = 'u8[4096]{0}', space=vmem, size = 0x1000, scoped, tag = 'output window, operand 0, single buffered']
    #allocation3 [shape = 's32[1]{0}', space=sflag, size = 0x4, scoped, tag = 'scoped memory for tpu_custom_call.1']
    %12 = vsyncpa [#allocation3], 0
    // Predicated region
    $region2: #{tpu_custom_call.1} parent=1 // pred_check
      _
    $region3: #{tpu_custom_call.1} parent=1 // pred_check_branch
      %14 = sbr.rel (0) target = $region5
    $region4: #{tpu_custom_call.1} parent=1 // pred_region
      _
    $region5: #{tpu_custom_call.1} parent=1 // pred_fallthru
      _
    // Predicated region
    $region6: #{tpu_custom_call.1} parent=1 // pred_check
      _
    $region7: #{tpu_custom_call.1} parent=1 // pred_check_branch
      %16 = sbr.rel (0) target = $region9
    $region8: #{tpu_custom_call.1} parent=1 // pred_region
      _
    $region9: #{tpu_custom_call.1} parent=1 // pred_fallthru
      _
    // Predicated region
    $region10: #{tpu_custom_call.1} parent=1 // pred_check
      _
    $region11: #{tpu_custom_call.1} parent=1 // pred_check_branch
      %18 = sbr.rel (0) target = $region13
    $region12: #{tpu_custom_call.1} parent=1 // pred_region
      _
    $region13: #{tpu_custom_call.1} parent=1 // pred_fallthru
      _
    // Predicated region
    $region14: #{tpu_custom_call.1} parent=1 // pred_check
      _
    $region15: #{tpu_custom_call.1} parent=1 // pred_check_branch
      %20 = sbr.rel (0) target = $region17
    $region16: #{tpu_custom_call.1} parent=1 // pred_region
      _
    $region17: #{tpu_custom_call.1} parent=1 // pred_fallthru
      _
    // Predicated region
    $region18: #{tpu_custom_call.1} parent=1 // pred_check
      _
    $region19: #{tpu_custom_call.1} parent=1 // pred_check_branch
      %22 = sbr.rel (0) target = $region21
    $region20: #{tpu_custom_call.1} parent=1 // pred_region
      _
    $region21: #{tpu_custom_call.1} parent=1 // pred_fallthru
      _
    // Predicated region
    $region22: #{tpu_custom_call.1} parent=1 // pred_check
      _
    $region23: #{tpu_custom_call.1} parent=1 // pred_check_branch
      %24 = sbr.rel (0) target = $region25
    $region24: #{tpu_custom_call.1} parent=1 // pred_region
      _
    $region25: #{tpu_custom_call.1} parent=1 // pred_fallthru
      _
    // Predicated region
    $region26: #{tpu_custom_call.1} parent=1 // pred_check
      _
    $region27: #{tpu_custom_call.1} parent=1 // pred_check_branch
      %26 = sbr.rel (0) target = $region29
    $region28: #{tpu_custom_call.1} parent=1 // pred_region
      _
    $region29: #{tpu_custom_call.1} parent=1 // pred_fallthru
      _
    %v27 = vld [vmem:[%s0] sm:$0xff]
    %v28 = vld [vmem:[%s2] sm:$0xff]
    %v29 = vld [vmem:[%s2 + $0x8] sm:$0xff]
    %v30 = vld [vmem:[%s2 + $0x10] sm:$0xff]
    %v31 = vld [vmem:[%s1] sm:$0xff]
    %v32 = vld [vmem:[%s3] sm:$0xff]
    %vm33 = vcmask 64512
    %v35 = vsel %vm33, %v31, 0
    %37 = vmatprep.subr.mxu0 0.0
    %38 = vmatpush1.msra.mxu0 0.0
    %39 = vmatprep.subr.mxu0 0.0
    %40 = vmatpush1.msra.mxu0 0.0
    %41 = vmatprep.subr.mxu0 0.0
    %42 = vmatpush1.msra.mxu0 0.0
    %43 = vmatprep.subr.mxu0 0.0
    %44 = vmatpush1.msra.mxu0 0.0
    %45 = vmatprep.subr.mxu0 0.0
    %46 = vmatpush1.msra.mxu0 0.0
    %47 = vmatprep.subr.mxu0 0.0
    %48 = vmatpush1.msra.mxu0 0.0
    %49 = vmatprep.subr.mxu0 0.0
    %50 = vmatpush1.msra.mxu0 0.0
    %51 = vmatprep.subr.mxu0 0.0
    %52 = vmatpush1.msra.mxu0 0.0
    %53 = vmatprep.subr.mxu0 0.0
    %54 = vmatpush1.msra.mxu0 0.0
    %55 = vmatprep.subr.mxu0 0.0
    %56 = vmatpush1.msra.mxu0 0.0
    %57 = vmatprep.subr.mxu0 0.0
    %58 = vmatpush1.msra.mxu0 0.0
    %59 = vmatprep.subr.mxu0 0.0
    %60 = vmatpush1.msra.mxu0 0.0
    %61 = vmatprep.subr.mxu0 0.0
    %62 = vmatpush1.msra.mxu0 0.0
    %63 = vmatprep.subr.mxu0 0.0
    %64 = vmatpush1.msra.mxu0 0.0
    %65 = vmatprep.subr.mxu0 0.0
    %66 = vmatpush1.msra.mxu0 0.0
    %67 = vmatprep.subr.mxu0 0.0
    %68 = vmatpush1.msra.mxu0 %v32
    %69 = vmatprep.subr.mxu0 0.0
    %70 = vmatpush2.msra.mxu0 0.0
    %71 = vmatprep.subr.mxu0 0.0
    %72 = vmatpush2.msra.mxu0 0.0
    %73 = vmatprep.subr.mxu0 0.0
    %74 = vmatpush2.msra.mxu0 0.0
    %75 = vmatprep.subr.mxu0 0.0
    %76 = vmatpush2.msra.mxu0 0.0
    %77 = vmatprep.subr.mxu0 0.0
    %78 = vmatpush2.msra.mxu0 0.0
    %79 = vmatprep.subr.mxu0 0.0
    %80 = vmatpush2.msra.mxu0 0.0
    %81 = vmatprep.subr.mxu0 0.0
    %82 = vmatpush2.msra.mxu0 0.0
    %83 = vmatprep.subr.mxu0 0.0
    %84 = vmatpush2.msra.mxu0 0.0
    %85 = vmatprep.subr.mxu0 0.0
    %86 = vmatpush2.msra.mxu0 0.0
    %87 = vmatprep.subr.mxu0 0.0
    %88 = vmatpush2.msra.mxu0 0.0
    %89 = vmatprep.subr.mxu0 0.0
    %90 = vmatpush2.msra.mxu0 0.0
    %91 = vmatprep.subr.mxu0 0.0
    %92 = vmatpush2.msra.mxu0 0.0
    %93 = vmatprep.subr.mxu0 0.0
    %94 = vmatpush2.msra.mxu0 0.0
    %95 = vmatprep.subr.mxu0 0.0
    %96 = vmatpush2.msra.mxu0 0.0
    %97 = vmatprep.subr.mxu0 0.0
    %98 = vmatpush2.msra.mxu0 0.0
    %99 = vmatprep.subr.mxu0 0.0
    %100 = vmatpush2.msra.mxu0 0.0
    %101 = vmatprep.mubr.f32.mxu0 0.0
    %102 = vmatmul.mubr.f32.gmra.mxu0 %v35
    %v103 = vpop.f32.mrf.mxu0
    %v104 = vadd.f32 0.0, %v103
    %v105 = vpop.f32.mrf.mxu0
    %106 = vdwg.mxu0
    %vm107 = vcmask 195584
    %v109 = vsel %vm107, %v27, 0
    %111 = vmatprep.subr.mxu0 0.0
    %112 = vmatpush1.msra.mxu0 0.0
    %113 = vmatprep.subr.mxu0 0.0
    %114 = vmatpush1.msra.mxu0 0.0
    %115 = vmatprep.subr.mxu0 0.0
    %116 = vmatpush1.msra.mxu0 0.0
    %117 = vmatprep.subr.mxu0 0.0
    %118 = vmatpush1.msra.mxu0 0.0
    %119 = vmatprep.subr.mxu0 0.0
    %120 = vmatpush1.msra.mxu0 0.0
    %121 = vmatprep.subr.mxu0 0.0
    %122 = vmatpush1.msra.mxu0 0.0
    %123 = vmatprep.subr.mxu0 0.0
    %124 = vmatpush1.msra.mxu0 0.0
    %125 = vmatprep.subr.mxu0 0.0
    %126 = vmatpush1.msra.mxu0 0.0
    %127 = vmatprep.subr.mxu0 0.0
    %128 = vmatpush1.msra.mxu0 0.0
    %129 = vmatprep.subr.mxu0 0.0
    %130 = vmatpush1.msra.mxu0 0.0
    %131 = vmatprep.subr.mxu0 0.0
    %132 = vmatpush1.msra.mxu0 0.0
    %133 = vmatprep.subr.mxu0 0.0
    %134 = vmatpush1.msra.mxu0 0.0
    %135 = vmatprep.subr.mxu0 0.0
    %136 = vmatpush1.msra.mxu0 0.0
    %137 = vmatprep.subr.mxu0 0.0
    %138 = vmatpush1.msra.mxu0 %v30
    %139 = vmatprep.subr.mxu0 0.0
    %140 = vmatpush1.msra.mxu0 %v29
    %141 = vmatprep.subr.mxu0 0.0
    %142 = vmatpush1.msra.mxu0 %v28
    %143 = vmatprep.subr.mxu0 0.0
    %144 = vmatpush2.msra.mxu0 0.0
    %145 = vmatprep.subr.mxu0 0.0
    %146 = vmatpush2.msra.mxu0 0.0
    %147 = vmatprep.subr.mxu0 0.0
    %148 = vmatpush2.msra.mxu0 0.0
    %149 = vmatprep.subr.mxu0 0.0
    %150 = vmatpush2.msra.mxu0 0.0
    %151 = vmatprep.subr.mxu0 0.0
    %152 = vmatpush2.msra.mxu0 0.0
    %153 = vmatprep.subr.mxu0 0.0
    %154 = vmatpush2.msra.mxu0 0.0
    %155 = vmatprep.subr.mxu0 0.0
    %156 = vmatpush2.msra.mxu0 0.0
    %157 = vmatprep.subr.mxu0 0.0
    %158 = vmatpush2.msra.mxu0 0.0
    %159 = vmatprep.subr.mxu0 0.0
    %160 = vmatpush2.msra.mxu0 0.0
    %161 = vmatprep.subr.mxu0 0.0
    %162 = vmatpush2.msra.mxu0 0.0
    %163 = vmatprep.subr.mxu0 0.0
    %164 = vmatpush2.msra.mxu0 0.0
    %165 = vmatprep.subr.mxu0 0.0
    %166 = vmatpush2.msra.mxu0 0.0
    %167 = vmatprep.subr.mxu0 0.0
    %168 = vmatpush2.msra.mxu0 0.0
    %169 = vmatprep.subr.mxu0 0.0
    %170 = vmatpush2.msra.mxu0 0.0
    %171 = vmatprep.subr.mxu0 0.0
    %172 = vmatpush2.msra.mxu0 0.0
    %173 = vmatprep.subr.mxu0 0.0
    %174 = vmatpush2.msra.mxu0 0.0
    %175 = vmatprep.mubr.f32.mxu0 0.0
    %176 = vmatmul.mubr.f32.gmra.mxu0 %v109
    %v177 = vpop.f32.mrf.mxu0
    %v178 = vadd.f32 %v104, %v177
    %v179 = vpop.f32.mrf.mxu0
    %180 = vdwg.mxu0
    %v181 = vld [vmem:[%s4] sm:$0x1]
    %v183 = vlaneseq
    %v184 = vshrl.u32 %v183, 7
    %v185 = vsub.s32 0, %v184
    %v186 = vrot.slane %v181, %v185
    %v188 = vadd.f32 %v178, %v186
    %v189 = vmax.f32 %v188, 0.0
    %v190 = vld [vmem:[%s5] sm:$0xff]
    %v191 = vld [vmem:[%s5 + $0x8] sm:$0xff]
    %v192 = vld [vmem:[%s5 + $0x10] sm:$0xff]
    %v193 = vld [vmem:[%s5 + $0x18] sm:$0xff]
    %v194 = vld [vmem:[%s5 + $0x20] sm:$0xff]
    %v195 = vld [vmem:[%s5 + $0x28] sm:$0xff]
    %v196 = vld [vmem:[%s5 + $0x30] sm:$0xff]
    %v197 = vld [vmem:[%s5 + $0x38] sm:$0xff]
    %v198 = vld [vmem:[%s5 + $0x40] sm:$0xff]
    %v199 = vld [vmem:[%s5 + $0x48] sm:$0xff]
    %v200 = vld [vmem:[%s5 + $0x50] sm:$0xff]
    %v201 = vld [vmem:[%s5 + $0x58] sm:$0xff]
    %v202 = vld [vmem:[%s5 + $0x60] sm:$0xff]
    %v203 = vld [vmem:[%s5 + $0x68] sm:$0xff]
    %v204 = vld [vmem:[%s5 + $0x70] sm:$0xff]
    %v205 = vld [vmem:[%s5 + $0x78] sm:$0xff]
    %v206 = vld [vmem:[%s6] sm:$0x1]
    %v208 = vlaneseq
    %v209 = vshrl.u32 %v208, 7
    %v210 = vsub.s32 0, %v209
    %v211 = vrot.slane %v206, %v210
    %213 = vmatprep.subr.mxu0 0.0
    %214 = vmatpush1.msra.mxu0 %v205
    %215 = vmatprep.subr.mxu0 0.0
    %216 = vmatpush1.msra.mxu0 %v204
    %217 = vmatprep.subr.mxu0 0.0
    %218 = vmatpush1.msra.mxu0 %v203
    %219 = vmatprep.subr.mxu0 0.0
    %220 = vmatpush1.msra.mxu0 %v202
    %221 = vmatprep.subr.mxu0 0.0
    %222 = vmatpush1.msra.mxu0 %v201
    %223 = vmatprep.subr.mxu0 0.0
    %224 = vmatpush1.msra.mxu0 %v200
    %225 = vmatprep.subr.mxu0 0.0
    %226 = vmatpush1.msra.mxu0 %v199
    %227 = vmatprep.subr.mxu0 0.0
    %228 = vmatpush1.msra.mxu0 %v198
    %229 = vmatprep.subr.mxu0 0.0
    %230 = vmatpush1.msra.mxu0 %v197
    %231 = vmatprep.subr.mxu0 0.0
    %232 = vmatpush1.msra.mxu0 %v196
    %233 = vmatprep.subr.mxu0 0.0
    %234 = vmatpush1.msra.mxu0 %v195
    %235 = vmatprep.subr.mxu0 0.0
    %236 = vmatpush1.msra.mxu0 %v194
    %237 = vmatprep.subr.mxu0 0.0
    %238 = vmatpush1.msra.mxu0 %v193
    %239 = vmatprep.subr.mxu0 0.0
    %240 = vmatpush1.msra.mxu0 %v192
    %241 = vmatprep.subr.mxu0 0.0
    %242 = vmatpush1.msra.mxu0 %v191
    %243 = vmatprep.subr.mxu0 0.0
    %244 = vmatpush1.msra.mxu0 %v190
    %245 = vmatprep.subr.mxu0 0.0
    %246 = vmatpush2.msra.mxu0 0.0
    %247 = vmatprep.subr.mxu0 0.0
    %248 = vmatpush2.msra.mxu0 0.0
    %249 = vmatprep.subr.mxu0 0.0
    %250 = vmatpush2.msra.mxu0 0.0
    %251 = vmatprep.subr.mxu0 0.0
    %252 = vmatpush2.msra.mxu0 0.0
    %253 = vmatprep.subr.mxu0 0.0
    %254 = vmatpush2.msra.mxu0 0.0
    %255 = vmatprep.subr.mxu0 0.0
    %256 = vmatpush2.msra.mxu0 0.0
    %257 = vmatprep.subr.mxu0 0.0
    %258 = vmatpush2.msra.mxu0 0.0
    %259 = vmatprep.subr.mxu0 0.0
    %260 = vmatpush2.msra.mxu0 0.0
    %261 = vmatprep.subr.mxu0 0.0
    %262 = vmatpush2.msra.mxu0 0.0
    %263 = vmatprep.subr.mxu0 0.0
    %264 = vmatpush2.msra.mxu0 0.0
    %265 = vmatprep.subr.mxu0 0.0
    %266 = vmatpush2.msra.mxu0 0.0
    %267 = vmatprep.subr.mxu0 0.0
    %268 = vmatpush2.msra.mxu0 0.0
    %269 = vmatprep.subr.mxu0 0.0
    %270 = vmatpush2.msra.mxu0 0.0
    %271 = vmatprep.subr.mxu0 0.0
    %272 = vmatpush2.msra.mxu0 0.0
    %273 = vmatprep.subr.mxu0 0.0
    %274 = vmatpush2.msra.mxu0 0.0
    %275 = vmatprep.subr.mxu0 0.0
    %276 = vmatpush2.msra.mxu0 0.0
    %277 = vmatprep.mubr.f32.mxu0 0.0
    %278 = vmatmul.mubr.f32.gmra.mxu0 %v189
    %v279 = vpop.f32.mrf.mxu0
    %v280 = vadd.f32 %v211, %v279
    %v281 = vpop.f32.mrf.mxu0
    %282 = vdwg.mxu0
    %vm283 = vcmask 130048
    %284 = vst.msk [vmem:[#allocation2] sm:$0xff] %vm283, %v280
    // Predicated region
    $region30: #{tpu_custom_call.1} parent=1 // pred_check
      _
    $region31: #{tpu_custom_call.1} parent=1 // pred_check_branch
      %286 = sbr.rel (0) target = $region33
    $region32: #{tpu_custom_call.1} parent=1 // pred_region
      %s288 = ssub.s32 128, 128
      %289 = vsyncadd [#allocation3], %s288
      %s291 = sshll.u32 [#allocation2], 4
      %s292 = int_to_ptr.vmem [resolvable:$true] %s291
      %294 = dma.vmem_to_hbm [thread:$0]  %s292, 128, %s7, [#allocation3]
    $region33: #{tpu_custom_call.1} parent=1 // pred_fallthru
      _
    // Predicated region
    $region34: #{tpu_custom_call.1} parent=1 // pred_check
      _
    $region35: #{tpu_custom_call.1} parent=1 // pred_check_branch
      %296 = sbr.rel (0) target = $region37
    $region36: #{tpu_custom_call.1} parent=1 // pred_region
      %297 = dma.done [#allocation3], 128
    $region37: #{tpu_custom_call.1} parent=1 // pred_fallthru
      _
    %298 = vsyncpa [#allocation3], 1

</llo_original>
